<compile_context>
chip_gen: v5e
topology: v5e:2x2
jax: 0.10.0
libtpu: 0.0.40
codegen_flags: <defaults>
</compile_context>

<pallas_src>
import functools

import jax
import jax.numpy as jnp
import numpy as np
from jax.experimental import pallas as pl
from jax.experimental.pallas import tpu as pltpu


def _pconv_kernel(xm_ref, mch_ref, w_ref, shift_ref, bsh_ref, out_ref, nm_ref,
                  *, kh, kw, dilation, wp, out_len):
    """One sample (grid step): in-kernel im2col + folded bias/BN/ReLU epilogue.

    xm_ref:    (Cin, slab_len)     bf16  x*mask, spatially padded, rows flattened (stride 1)
    mch_ref:   (1, slab_len)       f32   channel-summed mask, same layout
    w_ref:     (kh*kw, Cout, Cin)  bf16  conv weights with the BN scale folded in
    shift_ref: (Cout, 1)           f32   bn_beta - bn_mean * scale
    bsh_ref:   (Cout, 1)           f32   bias * scale + shift
    out_ref:   (Cout, out_len)     bf16  flattened (Hout, Wp) rows; cols >= Wout are garbage
    nm_ref:    (1, out_len)        bf16  updated mask row (0/1)
    """
    cout = out_ref.shape[0]
    acc = jnp.zeros((cout, out_len), jnp.float32)
    msum = jnp.zeros((1, out_len), jnp.float32)
    # Statically unrolled loop over the kh*kw taps; each view is a static lane-offset
    # slice of the resident slab -> no HBM amplification, just shifted VMEM loads.
    for k in range(kh * kw):
        ki, kj = divmod(k, kw)
        off = ki * dilation * wp + kj * dilation
        acc = acc + jnp.dot(w_ref[k], xm_ref[:, off:off + out_len],
                            preferred_element_type=jnp.float32)
        msum = msum + mch_ref[:, off:off + out_len]

    # Mask-sum renormalization.  Mask is exact 0/1, so msum == 0 identifies holes exactly.
    holes = msum == 0.0
    inv = pl.reciprocal(jnp.where(holes, 1.0, msum), approx=True)

    out = acc * inv + bsh_ref[...]               # valid: conv*scale/msum + b*scale + shift
    out = jnp.where(holes, shift_ref[...], out)  # holes: output forced to 0, then BN -> shift
    out = jnp.maximum(out, 0.0)                  # ReLU
    out_ref[...] = out.astype(out_ref.dtype)
    nm_ref[...] = jnp.where(holes, 0.0, 1.0).astype(nm_ref.dtype)


def pconv_block_forward(x_nchw, mask_nchw, weight, bias, bn_gamma, bn_beta,
                        bn_mean, bn_var, *, stride=1, padding=1, dilation=1, eps=1e-5):
    N, Cin, H, W = x_nchw.shape
    Cout, Cin_w, kh, kw = weight.shape
    # TODO(synk): stride > 1 and groups > 1 are not supported by the flattened-width
    # in-kernel im2col formulation.
    assert stride == 1 and Cin_w == Cin

    Hp, Wp = H + 2 * padding, W + 2 * padding
    Hout = Hp - dilation * (kh - 1)
    Wout = Wp - dilation * (kw - 1)
    assert Hout > 0 and Wout > 0

    out_len = -(-(Hout * Wp) // 128) * 128                       # lane-dense output length
    max_off = dilation * (kh - 1) * Wp + dilation * (kw - 1)
    slab_len = -(-(out_len + max_off) // 128) * 128               # per-sample slab length

    xf = x_nchw.astype(jnp.float32)
    mf = mask_nchw.astype(jnp.float32)

    # x*mask -> spatial zero-pad -> flatten rows -> lane/slack pad.  All elementwise/pad
    # ops; XLA fuses them into one pass over the (already minimal) x*mask tensor.
    xm = jnp.pad(xf * mf, ((0, 0), (0, 0), (padding, padding), (padding, padding)))
    xm = xm.reshape(N, Cin, Hp * Wp)
    xm = jnp.pad(xm, ((0, 0), (0, 0), (0, slab_len - Hp * Wp))).astype(jnp.bfloat16)

    # mask_conv(mask) with all-ones weights (groups=1) == window-sum of the
    # channel-summed mask; keep it f32 so the ==0 hole test stays exact.
    mch = jnp.pad(jnp.sum(mf, axis=1, keepdims=True),
                  ((0, 0), (0, 0), (padding, padding), (padding, padding)))
    mch = jnp.pad(mch.reshape(N, 1, Hp * Wp), ((0, 0), (0, 0), (0, slab_len - Hp * Wp)))

    # BatchNorm2d (inference-mode) affine, scale folded into the weights, bias folded
    # into bsh = bias*scale + shift.
    inv_std = 1.0 / jnp.sqrt(bn_var.astype(jnp.float32) + eps)
    scale = bn_gamma.astype(jnp.float32) * inv_std                # (Cout,)
    shift = bn_beta.astype(jnp.float32) - bn_mean.astype(jnp.float32) * scale
    w_kp = jnp.transpose(weight.astype(jnp.float32) * scale[:, None, None, None],
                         (2, 3, 0, 1)).reshape(kh * kw, Cout, Cin).astype(jnp.bfloat16)
    shift_c = shift.reshape(Cout, 1)
    bsh_c = (bias.astype(jnp.float32) * scale + shift).reshape(Cout, 1)

    # Explicit VMEM budget: double-buffered slabs/outputs + resident params, 4x margin.
    est = (2 * (Cin * slab_len * 2 + slab_len * 4 + Cout * out_len * 2 + out_len * 2)
           + 2 * (kh * kw * Cout * Cin * 2 + 2 * Cout * 4))
    vmem_limit = int(min(max(4 * est + (4 << 20), 32 << 20), 48 << 20))

    kernel = functools.partial(_pconv_kernel, kh=kh, kw=kw, dilation=dilation,
                               wp=Wp, out_len=out_len)
    out_flat, nm_flat = pl.pallas_call(
        kernel,
        out_shape=(jax.ShapeDtypeStruct((N, Cout, out_len), jnp.bfloat16),
                   jax.ShapeDtypeStruct((N, 1, out_len), jnp.bfloat16)),
        grid_spec=pltpu.PrefetchScalarGridSpec(
            num_scalar_prefetch=0,
            grid=(N,),
            in_specs=[
                pl.BlockSpec((None, Cin, slab_len), lambda n: (n, 0, 0)),  # x*mask slab
                pl.BlockSpec((None, 1, slab_len), lambda n: (n, 0, 0)),    # mask row slab
                pl.BlockSpec((kh * kw, Cout, Cin), lambda n: (0, 0, 0)),   # scaled weights
                pl.BlockSpec((Cout, 1), lambda n: (0, 0)),                 # bn shift
                pl.BlockSpec((Cout, 1), lambda n: (0, 0)),                 # bias*scale+shift
            ],
            out_specs=[
                pl.BlockSpec((None, Cout, out_len), lambda n: (n, 0, 0)),
                pl.BlockSpec((None, 1, out_len), lambda n: (n, 0, 0)),
            ],
        ),
        compiler_params=pltpu.CompilerParams(
            dimension_semantics=("parallel",),
            vmem_limit_bytes=vmem_limit,
        ),
    )(xm, mch, w_kp, shift_c, bsh_c)

    # Strip the flat tail and the (kw-1)*dilation garbage columns per output row.
    out = out_flat[:, :, :Hout * Wp].reshape(N, Cout, Hout, Wp)[:, :, :, :Wout]
    nm = nm_flat[:, :, :Hout * Wp].reshape(N, 1, Hout, Wp)[:, :, :, :Wout]
    # Module semantics: new_mask has the same shape as the output.  Consumers that accept
    # the compact (N, 1, Hout, Wout) row should skip this broadcast materialization.
    new_mask = jnp.broadcast_to(nm.astype(jnp.float32), (N, Cout, Hout, Wout))
    return out, new_mask


def _ref_forward(x, mask, weight, bias, gamma, beta, mean, var,
                 stride, padding, dilation, eps):
    """Pure-JAX reference of the PyTorch forward (NCHW, BN in inference mode)."""
    dn = jax.lax.conv_dimension_numbers(x.shape, weight.shape, ("NCHW", "OIHW", "NCHW"))
    conv = lambda a, w: jax.lax.conv_general_dilated(
        a, w, (stride, stride), [(padding, padding), (padding, padding)],
        rhs_dilation=(dilation, dilation), dimension_numbers=dn,
        precision=jax.lax.Precision.HIGHEST)
    b = bias.reshape(1, -1, 1, 1)
    out = conv(x * mask, weight) + b
    out_mask = conv(mask, jnp.ones_like(weight))
    holes = out_mask == 0.0
    mask_sum = jnp.where(holes, 1.0, out_mask)
    out_pre = (out - b) / mask_sum + b
    out_v = jnp.where(holes, 0.0, out_pre)
    new_mask = jnp.broadcast_to(jnp.where(holes, 0.0, 1.0), out_v.shape)
    scale = (gamma / jnp.sqrt(var + eps)).reshape(1, -1, 1, 1)
    shift = (beta - mean * gamma / jnp.sqrt(var + eps)).reshape(1, -1, 1, 1)
    out_v = jnp.maximum(out_v * scale + shift, 0.0)
    return out_v, new_mask


if __name__ == "__main__":
    # PConvBlock(in_channels=4, out_channels=8, kernel=3, stride=1, padding=1,
    #            dilation=1, groups=1, bias=True, activation=ReLU, bn=True)
    N, Cin, H, W = 2, 4, 16, 16
    Cout, kk = 8, 3
    stride, padding, dilation = 1, 1, 1

    key = jax.random.PRNGKey(0)
    k_x, k_m, k_w, k_b, k_g, k_bb, k_rm, k_rv = jax.random.split(key, 8)

    x = jax.random.normal(k_x, (N, Cin, H, W), dtype=jnp.float32)
    # Sparse binary mask so both the hole path and the renormalization path are exercised.
    mask = (jax.random.uniform(k_m, (N, Cin, H, W)) > 0.9).astype(jnp.float32)

    fan_in = Cin * kk * kk
    weight = jax.random.normal(k_w, (Cout, Cin, kk, kk), dtype=jnp.float32) / np.sqrt(fan_in)
    bias = 0.1 * jax.random.normal(k_b, (Cout,), dtype=jnp.float32)
    # BatchNorm2d parameters (inference mode; running stats held fixed).
    bn_gamma = 1.0 + 0.1 * jax.random.normal(k_g, (Cout,), dtype=jnp.float32)
    bn_beta = 0.1 * jax.random.normal(k_bb, (Cout,), dtype=jnp.float32)
    bn_mean = 0.05 * jax.random.normal(k_rm, (Cout,), dtype=jnp.float32)
    bn_var = 1.0 + 0.1 * jax.random.uniform(k_rv, (Cout,), dtype=jnp.float32)

    fwd = jax.jit(functools.partial(pconv_block_forward, stride=stride,
                                    padding=padding, dilation=dilation))
    out, new_mask = fwd(x, mask, weight, bias, bn_gamma, bn_beta, bn_mean, bn_var)
    jax.block_until_ready(out)
    jax.block_until_ready(new_mask)

    ref_out, ref_mask = _ref_forward(
        x, mask, weight, bias, bn_gamma, bn_beta, bn_mean, bn_var,
        stride, padding, dilation, 1e-5)

    # bf16 weight/activation streams, approx reciprocal and bf16 output store
    # (f32 MXU accumulation) vs the f32 HIGHEST-precision reference -> loose tolerance.
    np.testing.assert_allclose(np.asarray(out, dtype=np.float32), np.asarray(ref_out),
                               rtol=2e-2, atol=2e-2)
    np.testing.assert_allclose(np.asarray(new_mask), np.asarray(ref_mask), rtol=0, atol=0)
    print("KERNEL_OK")
</pallas_src>

<mosaic_0001>
module attributes {stable_mosaic.version = 11 : i64} {
  func.func @_pconv_kernel(%arg0: i32, %arg1: memref<1x4x512xbf16, #tpu.memory_space<vmem>>, %arg2: memref<1x1x512xf32, #tpu.memory_space<vmem>>, %arg3: memref<9x8x4xbf16, #tpu.memory_space<vmem>>, %arg4: memref<8x1xf32, #tpu.memory_space<vmem>>, %arg5: memref<8x1xf32, #tpu.memory_space<vmem>>, %arg6: memref<1x8x384xbf16, #tpu.memory_space<vmem>>, %arg7: memref<1x1x384xbf16, #tpu.memory_space<vmem>>) attributes {dimension_semantics = [#tpu.dimension_semantics<parallel>], iteration_bounds = array<i64: 2>, scalar_prefetch = 0 : i64, scratch_operands = 0 : i64, tpu.core_type = #tpu.core_type<tc>, window_params = [{transform_indices = @transform_0, window_bounds = array<i64: 1, 4, 512>}, {transform_indices = @transform_1, window_bounds = array<i64: 1, 1, 512>}, {pipeline_mode = #tpu.pipeline_mode<synchronous>, transform_indices = @transform_2, window_bounds = array<i64: 9, 8, 4>}, {pipeline_mode = #tpu.pipeline_mode<synchronous>, transform_indices = @transform_3, window_bounds = array<i64: 8, 1>}, {pipeline_mode = #tpu.pipeline_mode<synchronous>, transform_indices = @transform_4, window_bounds = array<i64: 8, 1>}, {transform_indices = @transform_5, window_bounds = array<i64: 1, 8, 384>}, {transform_indices = @transform_6, window_bounds = array<i64: 1, 1, 384>}]} {
    %cst = arith.constant 0.000000e+00 : f32
    %0 = vector.broadcast %cst : f32 to vector<8x384xf32>
    %cst_0 = arith.constant 0.000000e+00 : f32
    %1 = vector.broadcast %cst_0 : f32 to vector<1x384xf32>
    %c0 = arith.constant 0 : index
    %c0_1 = arith.constant 0 : index
    %c0_2 = arith.constant 0 : index
    %2 = vector.load %arg3[%c0, %c0_1, %c0_2] : memref<9x8x4xbf16, #tpu.memory_space<vmem>>, vector<1x8x4xbf16>
    %3 = vector.shape_cast %2 : vector<1x8x4xbf16> to vector<8x4xbf16>
    %c0_3 = arith.constant 0 : index
    %c0_4 = arith.constant 0 : index
    %c0_5 = arith.constant 0 : index
    %4 = vector.load %arg1[%c0_3, %c0_4, %c0_5] : memref<1x4x512xbf16, #tpu.memory_space<vmem>>, vector<1x4x384xbf16>
    %5 = vector.shape_cast %4 : vector<1x4x384xbf16> to vector<4x384xbf16>
    %cst_6 = arith.constant dense<0.000000e+00> : vector<8x384xf32>
    %6 = tpu.matmul %3, %5, %cst_6 {dimension_numbers = #tpu.dot_dimension_numbers<[1], [0], [0], [1], [0, 0, 1, 1], [], []>} : vector<8x4xbf16>, vector<4x384xbf16>, vector<8x384xf32> -> vector<8x384xf32>
    %7 = arith.addf %0, %6 : vector<8x384xf32>
    %c0_7 = arith.constant 0 : index
    %c0_8 = arith.constant 0 : index
    %c0_9 = arith.constant 0 : index
    %8 = vector.load %arg2[%c0_7, %c0_8, %c0_9] : memref<1x1x512xf32, #tpu.memory_space<vmem>>, vector<1x1x384xf32>
    %9 = vector.shape_cast %8 : vector<1x1x384xf32> to vector<1x384xf32>
    %10 = arith.addf %1, %9 : vector<1x384xf32>
    %c1 = arith.constant 1 : index
    %c0_10 = arith.constant 0 : index
    %c0_11 = arith.constant 0 : index
    %11 = vector.load %arg3[%c1, %c0_10, %c0_11] : memref<9x8x4xbf16, #tpu.memory_space<vmem>>, vector<1x8x4xbf16>
    %12 = vector.shape_cast %11 : vector<1x8x4xbf16> to vector<8x4xbf16>
    %c0_12 = arith.constant 0 : index
    %c0_13 = arith.constant 0 : index
    %c1_14 = arith.constant 1 : index
    %13 = vector.load %arg1[%c0_12, %c0_13, %c1_14] : memref<1x4x512xbf16, #tpu.memory_space<vmem>>, vector<1x4x384xbf16>
    %14 = vector.shape_cast %13 : vector<1x4x384xbf16> to vector<4x384xbf16>
    %cst_15 = arith.constant dense<0.000000e+00> : vector<8x384xf32>
    %15 = tpu.matmul %12, %14, %cst_15 {dimension_numbers = #tpu.dot_dimension_numbers<[1], [0], [0], [1], [0, 0, 1, 1], [], []>} : vector<8x4xbf16>, vector<4x384xbf16>, vector<8x384xf32> -> vector<8x384xf32>
    %16 = arith.addf %7, %15 : vector<8x384xf32>
    %c0_16 = arith.constant 0 : index
    %c0_17 = arith.constant 0 : index
    %c1_18 = arith.constant 1 : index
    %17 = vector.load %arg2[%c0_16, %c0_17, %c1_18] : memref<1x1x512xf32, #tpu.memory_space<vmem>>, vector<1x1x384xf32>
    %18 = vector.shape_cast %17 : vector<1x1x384xf32> to vector<1x384xf32>
    %19 = arith.addf %10, %18 : vector<1x384xf32>
    %c2 = arith.constant 2 : index
    %c0_19 = arith.constant 0 : index
    %c0_20 = arith.constant 0 : index
    %20 = vector.load %arg3[%c2, %c0_19, %c0_20] : memref<9x8x4xbf16, #tpu.memory_space<vmem>>, vector<1x8x4xbf16>
    %21 = vector.shape_cast %20 : vector<1x8x4xbf16> to vector<8x4xbf16>
    %c0_21 = arith.constant 0 : index
    %c0_22 = arith.constant 0 : index
    %c2_23 = arith.constant 2 : index
    %22 = vector.load %arg1[%c0_21, %c0_22, %c2_23] : memref<1x4x512xbf16, #tpu.memory_space<vmem>>, vector<1x4x384xbf16>
    %23 = vector.shape_cast %22 : vector<1x4x384xbf16> to vector<4x384xbf16>
    %cst_24 = arith.constant dense<0.000000e+00> : vector<8x384xf32>
    %24 = tpu.matmul %21, %23, %cst_24 {dimension_numbers = #tpu.dot_dimension_numbers<[1], [0], [0], [1], [0, 0, 1, 1], [], []>} : vector<8x4xbf16>, vector<4x384xbf16>, vector<8x384xf32> -> vector<8x384xf32>
    %25 = arith.addf %16, %24 : vector<8x384xf32>
    %c0_25 = arith.constant 0 : index
    %c0_26 = arith.constant 0 : index
    %c2_27 = arith.constant 2 : index
    %26 = vector.load %arg2[%c0_25, %c0_26, %c2_27] : memref<1x1x512xf32, #tpu.memory_space<vmem>>, vector<1x1x384xf32>
    %27 = vector.shape_cast %26 : vector<1x1x384xf32> to vector<1x384xf32>
    %28 = arith.addf %19, %27 : vector<1x384xf32>
    %c3 = arith.constant 3 : index
    %c0_28 = arith.constant 0 : index
    %c0_29 = arith.constant 0 : index
    %29 = vector.load %arg3[%c3, %c0_28, %c0_29] : memref<9x8x4xbf16, #tpu.memory_space<vmem>>, vector<1x8x4xbf16>
    %30 = vector.shape_cast %29 : vector<1x8x4xbf16> to vector<8x4xbf16>
    %c0_30 = arith.constant 0 : index
    %c0_31 = arith.constant 0 : index
    %c18 = arith.constant 18 : index
    %31 = vector.load %arg1[%c0_30, %c0_31, %c18] : memref<1x4x512xbf16, #tpu.memory_space<vmem>>, vector<1x4x384xbf16>
    %32 = vector.shape_cast %31 : vector<1x4x384xbf16> to vector<4x384xbf16>
    %cst_32 = arith.constant dense<0.000000e+00> : vector<8x384xf32>
    %33 = tpu.matmul %30, %32, %cst_32 {dimension_numbers = #tpu.dot_dimension_numbers<[1], [0], [0], [1], [0, 0, 1, 1], [], []>} : vector<8x4xbf16>, vector<4x384xbf16>, vector<8x384xf32> -> vector<8x384xf32>
    %34 = arith.addf %25, %33 : vector<8x384xf32>
    %c0_33 = arith.constant 0 : index
    %c0_34 = arith.constant 0 : index
    %c18_35 = arith.constant 18 : index
    %35 = vector.load %arg2[%c0_33, %c0_34, %c18_35] : memref<1x1x512xf32, #tpu.memory_space<vmem>>, vector<1x1x384xf32>
    %36 = vector.shape_cast %35 : vector<1x1x384xf32> to vector<1x384xf32>
    %37 = arith.addf %28, %36 : vector<1x384xf32>
    %c4 = arith.constant 4 : index
    %c0_36 = arith.constant 0 : index
    %c0_37 = arith.constant 0 : index
    %38 = vector.load %arg3[%c4, %c0_36, %c0_37] : memref<9x8x4xbf16, #tpu.memory_space<vmem>>, vector<1x8x4xbf16>
    %39 = vector.shape_cast %38 : vector<1x8x4xbf16> to vector<8x4xbf16>
    %c0_38 = arith.constant 0 : index
    %c0_39 = arith.constant 0 : index
    %c19 = arith.constant 19 : index
    %40 = vector.load %arg1[%c0_38, %c0_39, %c19] : memref<1x4x512xbf16, #tpu.memory_space<vmem>>, vector<1x4x384xbf16>
    %41 = vector.shape_cast %40 : vector<1x4x384xbf16> to vector<4x384xbf16>
    %cst_40 = arith.constant dense<0.000000e+00> : vector<8x384xf32>
    %42 = tpu.matmul %39, %41, %cst_40 {dimension_numbers = #tpu.dot_dimension_numbers<[1], [0], [0], [1], [0, 0, 1, 1], [], []>} : vector<8x4xbf16>, vector<4x384xbf16>, vector<8x384xf32> -> vector<8x384xf32>
    %43 = arith.addf %34, %42 : vector<8x384xf32>
    %c0_41 = arith.constant 0 : index
    %c0_42 = arith.constant 0 : index
    %c19_43 = arith.constant 19 : index
    %44 = vector.load %arg2[%c0_41, %c0_42, %c19_43] : memref<1x1x512xf32, #tpu.memory_space<vmem>>, vector<1x1x384xf32>
    %45 = vector.shape_cast %44 : vector<1x1x384xf32> to vector<1x384xf32>
    %46 = arith.addf %37, %45 : vector<1x384xf32>
    %c5 = arith.constant 5 : index
    %c0_44 = arith.constant 0 : index
    %c0_45 = arith.constant 0 : index
    %47 = vector.load %arg3[%c5, %c0_44, %c0_45] : memref<9x8x4xbf16, #tpu.memory_space<vmem>>, vector<1x8x4xbf16>
    %48 = vector.shape_cast %47 : vector<1x8x4xbf16> to vector<8x4xbf16>
    %c0_46 = arith.constant 0 : index
    %c0_47 = arith.constant 0 : index
    %c20 = arith.constant 20 : index
    %49 = vector.load %arg1[%c0_46, %c0_47, %c20] : memref<1x4x512xbf16, #tpu.memory_space<vmem>>, vector<1x4x384xbf16>
    %50 = vector.shape_cast %49 : vector<1x4x384xbf16> to vector<4x384xbf16>
    %cst_48 = arith.constant dense<0.000000e+00> : vector<8x384xf32>
    %51 = tpu.matmul %48, %50, %cst_48 {dimension_numbers = #tpu.dot_dimension_numbers<[1], [0], [0], [1], [0, 0, 1, 1], [], []>} : vector<8x4xbf16>, vector<4x384xbf16>, vector<8x384xf32> -> vector<8x384xf32>
    %52 = arith.addf %43, %51 : vector<8x384xf32>
    %c0_49 = arith.constant 0 : index
    %c0_50 = arith.constant 0 : index
    %c20_51 = arith.constant 20 : index
    %53 = vector.load %arg2[%c0_49, %c0_50, %c20_51] : memref<1x1x512xf32, #tpu.memory_space<vmem>>, vector<1x1x384xf32>
    %54 = vector.shape_cast %53 : vector<1x1x384xf32> to vector<1x384xf32>
    %55 = arith.addf %46, %54 : vector<1x384xf32>
    %c6 = arith.constant 6 : index
    %c0_52 = arith.constant 0 : index
    %c0_53 = arith.constant 0 : index
    %56 = vector.load %arg3[%c6, %c0_52, %c0_53] : memref<9x8x4xbf16, #tpu.memory_space<vmem>>, vector<1x8x4xbf16>
    %57 = vector.shape_cast %56 : vector<1x8x4xbf16> to vector<8x4xbf16>
    %c0_54 = arith.constant 0 : index
    %c0_55 = arith.constant 0 : index
    %c36 = arith.constant 36 : index
    %58 = vector.load %arg1[%c0_54, %c0_55, %c36] : memref<1x4x512xbf16, #tpu.memory_space<vmem>>, vector<1x4x384xbf16>
    %59 = vector.shape_cast %58 : vector<1x4x384xbf16> to vector<4x384xbf16>
    %cst_56 = arith.constant dense<0.000000e+00> : vector<8x384xf32>
    %60 = tpu.matmul %57, %59, %cst_56 {dimension_numbers = #tpu.dot_dimension_numbers<[1], [0], [0], [1], [0, 0, 1, 1], [], []>} : vector<8x4xbf16>, vector<4x384xbf16>, vector<8x384xf32> -> vector<8x384xf32>
    %61 = arith.addf %52, %60 : vector<8x384xf32>
    %c0_57 = arith.constant 0 : index
    %c0_58 = arith.constant 0 : index
    %c36_59 = arith.constant 36 : index
    %62 = vector.load %arg2[%c0_57, %c0_58, %c36_59] : memref<1x1x512xf32, #tpu.memory_space<vmem>>, vector<1x1x384xf32>
    %63 = vector.shape_cast %62 : vector<1x1x384xf32> to vector<1x384xf32>
    %64 = arith.addf %55, %63 : vector<1x384xf32>
    %c7 = arith.constant 7 : index
    %c0_60 = arith.constant 0 : index
    %c0_61 = arith.constant 0 : index
    %65 = vector.load %arg3[%c7, %c0_60, %c0_61] : memref<9x8x4xbf16, #tpu.memory_space<vmem>>, vector<1x8x4xbf16>
    %66 = vector.shape_cast %65 : vector<1x8x4xbf16> to vector<8x4xbf16>
    %c0_62 = arith.constant 0 : index
    %c0_63 = arith.constant 0 : index
    %c37 = arith.constant 37 : index
    %67 = vector.load %arg1[%c0_62, %c0_63, %c37] : memref<1x4x512xbf16, #tpu.memory_space<vmem>>, vector<1x4x384xbf16>
    %68 = vector.shape_cast %67 : vector<1x4x384xbf16> to vector<4x384xbf16>
    %cst_64 = arith.constant dense<0.000000e+00> : vector<8x384xf32>
    %69 = tpu.matmul %66, %68, %cst_64 {dimension_numbers = #tpu.dot_dimension_numbers<[1], [0], [0], [1], [0, 0, 1, 1], [], []>} : vector<8x4xbf16>, vector<4x384xbf16>, vector<8x384xf32> -> vector<8x384xf32>
    %70 = arith.addf %61, %69 : vector<8x384xf32>
    %c0_65 = arith.constant 0 : index
    %c0_66 = arith.constant 0 : index
    %c37_67 = arith.constant 37 : index
    %71 = vector.load %arg2[%c0_65, %c0_66, %c37_67] : memref<1x1x512xf32, #tpu.memory_space<vmem>>, vector<1x1x384xf32>
    %72 = vector.shape_cast %71 : vector<1x1x384xf32> to vector<1x384xf32>
    %73 = arith.addf %64, %72 : vector<1x384xf32>
    %c8 = arith.constant 8 : index
    %c0_68 = arith.constant 0 : index
    %c0_69 = arith.constant 0 : index
    %74 = vector.load %arg3[%c8, %c0_68, %c0_69] : memref<9x8x4xbf16, #tpu.memory_space<vmem>>, vector<1x8x4xbf16>
    %75 = vector.shape_cast %74 : vector<1x8x4xbf16> to vector<8x4xbf16>
    %c0_70 = arith.constant 0 : index
    %c0_71 = arith.constant 0 : index
    %c38 = arith.constant 38 : index
    %76 = vector.load %arg1[%c0_70, %c0_71, %c38] : memref<1x4x512xbf16, #tpu.memory_space<vmem>>, vector<1x4x384xbf16>
    %77 = vector.shape_cast %76 : vector<1x4x384xbf16> to vector<4x384xbf16>
    %cst_72 = arith.constant dense<0.000000e+00> : vector<8x384xf32>
    %78 = tpu.matmul %75, %77, %cst_72 {dimension_numbers = #tpu.dot_dimension_numbers<[1], [0], [0], [1], [0, 0, 1, 1], [], []>} : vector<8x4xbf16>, vector<4x384xbf16>, vector<8x384xf32> -> vector<8x384xf32>
    %79 = arith.addf %70, %78 : vector<8x384xf32>
    %c0_73 = arith.constant 0 : index
    %c0_74 = arith.constant 0 : index
    %c38_75 = arith.constant 38 : index
    %80 = vector.load %arg2[%c0_73, %c0_74, %c38_75] : memref<1x1x512xf32, #tpu.memory_space<vmem>>, vector<1x1x384xf32>
    %81 = vector.shape_cast %80 : vector<1x1x384xf32> to vector<1x384xf32>
    %82 = arith.addf %73, %81 : vector<1x384xf32>
    %cst_76 = arith.constant 0.000000e+00 : f32
    %83 = vector.broadcast %cst_76 : f32 to vector<1x384xf32>
    %84 = arith.cmpf oeq, %82, %83 : vector<1x384xf32>
    %cst_77 = arith.constant 1.000000e+00 : f32
    %85 = vector.broadcast %cst_77 : f32 to vector<1x384xf32>
    %86 = arith.select %84, %85, %82 : vector<1x384xi1>, vector<1x384xf32>
    %87 = tpu.reciprocal %86 {approx = true} : vector<1x384xf32> -> vector<1x384xf32>
    %88 = vector.broadcast %87 : vector<1x384xf32> to vector<8x384xf32>
    %89 = arith.mulf %79, %88 : vector<8x384xf32>
    %c0_78 = arith.constant 0 : index
    %c0_79 = arith.constant 0 : index
    %90 = vector.load %arg5[%c0_78, %c0_79] : memref<8x1xf32, #tpu.memory_space<vmem>>, vector<8x1xf32>
    %91 = vector.broadcast %90 : vector<8x1xf32> to vector<8x384xf32>
    %92 = arith.addf %89, %91 : vector<8x384xf32>
    %c0_80 = arith.constant 0 : index
    %c0_81 = arith.constant 0 : index
    %93 = vector.load %arg4[%c0_80, %c0_81] : memref<8x1xf32, #tpu.memory_space<vmem>>, vector<8x1xf32>
    %94 = vector.shape_cast %84 : vector<1x384xi1> to vector<1x384xi1>
    %95 = vector.broadcast %94 : vector<1x384xi1> to vector<8x384xi1>
    %96 = vector.shape_cast %93 : vector<8x1xf32> to vector<8x1xf32>
    %97 = vector.broadcast %96 : vector<8x1xf32> to vector<8x384xf32>
    %98 = arith.select %95, %97, %92 : vector<8x384xi1>, vector<8x384xf32>
    %cst_82 = arith.constant 0.000000e+00 : f32
    %99 = vector.broadcast %cst_82 : f32 to vector<8x384xf32>
    %100 = arith.maximumf %98, %99 : vector<8x384xf32>
    %101 = arith.truncf %100 : vector<8x384xf32> to vector<8x384xbf16>
    %c0_83 = arith.constant 0 : index
    %c0_84 = arith.constant 0 : index
    %c0_85 = arith.constant 0 : index
    %102 = vector.load %arg6[%c0_83, %c0_84, %c0_85] : memref<1x8x384xbf16, #tpu.memory_space<vmem>>, vector<1x8x384xbf16>
    %103 = vector.shape_cast %102 : vector<1x8x384xbf16> to vector<8x384xbf16>
    %104 = vector.shape_cast %101 : vector<8x384xbf16> to vector<1x8x384xbf16>
    tpu.vector_store %arg6[%c0_83, %c0_84, %c0_85], %104 {strides = array<i32>} : memref<1x8x384xbf16, #tpu.memory_space<vmem>>, vector<1x8x384xbf16>,
    %cst_86 = arith.constant 0.000000e+00 : f32
    %cst_87 = arith.constant 1.000000e+00 : f32
    %105 = vector.broadcast %cst_86 : f32 to vector<1x384xf32>
    %106 = vector.broadcast %cst_87 : f32 to vector<1x384xf32>
    %107 = arith.select %84, %105, %106 : vector<1x384xi1>, vector<1x384xf32>
    %108 = arith.truncf %107 : vector<1x384xf32> to vector<1x384xbf16>
    %c0_88 = arith.constant 0 : index
    %c0_89 = arith.constant 0 : index
    %c0_90 = arith.constant 0 : index
    %109 = vector.load %arg7[%c0_88, %c0_89, %c0_90] : memref<1x1x384xbf16, #tpu.memory_space<vmem>>, vector<1x1x384xbf16>
    %110 = vector.shape_cast %109 : vector<1x1x384xbf16> to vector<1x384xbf16>
    %111 = vector.shape_cast %108 : vector<1x384xbf16> to vector<1x1x384xbf16>
    tpu.vector_store %arg7[%c0_88, %c0_89, %c0_90], %111 {strides = array<i32>} : memref<1x1x384xbf16, #tpu.memory_space<vmem>>, vector<1x1x384xbf16>,
    return
  }
  func.func @transform_0(%arg0: i32) -> (i32, i32, i32) {
    %c0_i32 = arith.constant 0 : i32
    %c0_i32_0 = arith.constant 0 : i32
    %c0_i32_1 = arith.constant 0 : i32
    return %arg0, %c0_i32, %c0_i32_0 : i32, i32, i32
  }
  func.func @transform_1(%arg0: i32) -> (i32, i32, i32) {
    %c0_i32 = arith.constant 0 : i32
    %c0_i32_0 = arith.constant 0 : i32
    %c0_i32_1 = arith.constant 0 : i32
    return %arg0, %c0_i32, %c0_i32_0 : i32, i32, i32
  }
  func.func @transform_2(%arg0: i32) -> (i32, i32, i32) {
    %c0_i32 = arith.constant 0 : i32
    %c0_i32_0 = arith.constant 0 : i32
    %c0_i32_1 = arith.constant 0 : i32
    %c0_i32_2 = arith.constant 0 : i32
    return %c0_i32, %c0_i32_0, %c0_i32_1 : i32, i32, i32
  }
  func.func @transform_3(%arg0: i32) -> (i32, i32) {
    %c0_i32 = arith.constant 0 : i32
    %c0_i32_0 = arith.constant 0 : i32
    %c0_i32_1 = arith.constant 0 : i32
    return %c0_i32, %c0_i32_0 : i32, i32
  }
  func.func @transform_4(%arg0: i32) -> (i32, i32) {
    %c0_i32 = arith.constant 0 : i32
    %c0_i32_0 = arith.constant 0 : i32
    %c0_i32_1 = arith.constant 0 : i32
    return %c0_i32, %c0_i32_0 : i32, i32
  }
  func.func @transform_5(%arg0: i32) -> (i32, i32, i32) {
    %c0_i32 = arith.constant 0 : i32
    %c0_i32_0 = arith.constant 0 : i32
    %c0_i32_1 = arith.constant 0 : i32
    return %arg0, %c0_i32, %c0_i32_0 : i32, i32, i32
  }
  func.func @transform_6(%arg0: i32) -> (i32, i32, i32) {
    %c0_i32 = arith.constant 0 : i32
    %c0_i32_0 = arith.constant 0 : i32
    %c0_i32_1 = arith.constant 0 : i32
    return %arg0, %c0_i32, %c0_i32_0 : i32, i32, i32
  }
}

</mosaic_0001>

<llo_original>
// kernel: pconv_block_forward.1
$region0: #{pconv_block_forward.1}
  #allocation0 [shape = 'u32[]', space=smem, size = 0x4, offset = 0x4, fixed_abs, tag = 'smem constant byte address 0x4 - core index']
  #allocation1 [shape = 'u32[72,128]{1,0:T(1,128)}', space=vmem, size = 0x9000, scoped, tag = 'internal scratch']
  %s0 = inlined_call_operand.vmem [shape: bf16[2,4,512], index: 0, kind: input, shape index: {}]
  %s1 = inlined_call_operand.vmem [shape: f32[2,1,512], index: 1, kind: input, shape index: {}]
  %s2 = inlined_call_operand.vmem [shape: bf16[9,8,4], index: 2, kind: input, shape index: {}]
  %s3 = inlined_call_operand.vmem [shape: f32[8,1], index: 3, kind: input, shape index: {}]
  %s4 = inlined_call_operand.vmem [shape: f32[8,1], index: 4, kind: input, shape index: {}]
  %s5 = inlined_call_operand.vmem [shape: bf16[2,8,384], index: 5, kind: output, shape index: {0}]
  %s6 = inlined_call_operand.vmem [shape: bf16[2,1,384], index: 6, kind: output, shape index: {1}]
  %7 = xla_tuple %s5, %s6
  %s8 = sld [smem:[#allocation0]]
  $region61: #{pconv_block_forward.1} parent=0
    _
  %s10 = ssub.s32 1, %s8
  %s11 = scalar_select 0, %s10, %s8
  loop: start=0, step=1, limit=4
  $region2: #{pconv_block_forward.1} parent=0 // loop_pre_header
    _
  $region3: #{pconv_block_forward.1} parent=0 // loop_header
    %s13 = sphi 0, %s17
    %p14 = scmp.ge.s32.totalorder %s13, 4
    %s23 = sphi 0, %s25
    %s26 = sphi 0, %s23
    %s27 = sphi 0, %s26
    %s43 = sphi 0, %s27
    %s49 = sphi 0, %s51
    %s52 = sphi 0, %s49
    %s53 = sphi 0, %s52
    %s69 = sphi 0, %s53
    %s73 = sphi 0, %s73
    %s75 = sphi 0, %s73
    %s76 = sphi 0, %s75
    %s90 = sphi 0, %s76
    %s94 = sphi 0, %s94
    %s96 = sphi 0, %s94
    %s97 = sphi 0, %s96
    %s111 = sphi 0, %s97
    %s115 = sphi 0, %s115
    %s117 = sphi 0, %s115
    %s118 = sphi 0, %s117
    %s132 = sphi 0, %s118
    %s138 = sphi 0, %s140
    %s141 = sphi 0, %s138
    %s142 = sphi 0, %s141
    %s158 = sphi 0, %s142
    %s164 = sphi 0, %s166
    %s167 = sphi 0, %s164
    %s168 = sphi 0, %s167
    %s184 = sphi 0, %s168
  $region4: #{pconv_block_forward.1} parent=0 // loop_header_branch
    %16 = sbr.rel (%p14) target = $region8
  $region5: #{pconv_block_forward.1} parent=0 // loop_body
    %s18 = ssub.s32 %s13, 1
    %s19 = ssub.s32 %s13, 2
    %s20 = sadd.s32 %s13, 1
    %s21 = ssub.s32 %s13, %s20
    %p22 = scmp.eq.s32.totalorder %s21, 0
    %s24 = sadd.s32 %s23, 1
    %s25 = scalar_select %p22, %s23, %s24
    %p28 = pneg %p22
    %p29 = scmp.eq.s32.totalorder %s13, 1
    %p30 = por %p28, %p29
    %p31 = scmp.ne.s32.totalorder %s23, %s26
    %p32 = scmp.eq.s32.totalorder %s13, 0
    %p33 = por %p31, %p32
    %p34 = scmp.ne.s32.totalorder %s23, %s26
    %p35 = scmp.eq.s32.totalorder %s18, 1
    %p36 = por %p34, %p35
    %p37 = scmp.ne.s32.totalorder %s26, %s27
    %p38 = scmp.eq.s32.totalorder %s18, 0
    %p39 = por %p37, %p38
    %p40 = scmp.ne.s32.totalorder %s26, %s27
    %p41 = scmp.eq.s32.totalorder %s19, 1
    %p42 = por %p40, %p41
    %p44 = scmp.ne.s32.totalorder %s27, %s43
    %p45 = scmp.eq.s32.totalorder %s19, 0
    %p46 = por %p44, %p45
    %s47 = ssub.s32 %s13, %s20
    %p48 = scmp.eq.s32.totalorder %s47, 0
    %s50 = sadd.s32 %s49, 1
    %s51 = scalar_select %p48, %s49, %s50
    %p54 = pneg %p48
    %p55 = scmp.eq.s32.totalorder %s13, 1
    %p56 = por %p54, %p55
    %p57 = scmp.ne.s32.totalorder %s49, %s52
    %p58 = scmp.eq.s32.totalorder %s13, 0
    %p59 = por %p57, %p58
    %p60 = scmp.ne.s32.totalorder %s49, %s52
    %p61 = scmp.eq.s32.totalorder %s18, 1
    %p62 = por %p60, %p61
    %p63 = scmp.ne.s32.totalorder %s52, %s53
    %p64 = scmp.eq.s32.totalorder %s18, 0
    %p65 = por %p63, %p64
    %p66 = scmp.ne.s32.totalorder %s52, %s53
    %p67 = scmp.eq.s32.totalorder %s19, 1
    %p68 = por %p66, %p67
    %p70 = scmp.ne.s32.totalorder %s53, %s69
    %p71 = scmp.eq.s32.totalorder %s19, 0
    %p72 = por %p70, %p71
    %s74 = sadd.s32 %s73, 1
    %p77 = scmp.eq.s32.totalorder %s13, 1
    %p78 = scmp.ne.s32.totalorder %s73, %s75
    %p79 = scmp.eq.s32.totalorder %s13, 0
    %p80 = por %p78, %p79
    %p81 = scmp.ne.s32.totalorder %s73, %s75
    %p82 = scmp.eq.s32.totalorder %s18, 1
    %p83 = por %p81, %p82
    %p84 = scmp.ne.s32.totalorder %s75, %s76
    %p85 = scmp.eq.s32.totalorder %s18, 0
    %p86 = por %p84, %p85
    %p87 = scmp.ne.s32.totalorder %s75, %s76
    %p88 = scmp.eq.s32.totalorder %s19, 1
    %p89 = por %p87, %p88
    %p91 = scmp.ne.s32.totalorder %s76, %s90
    %p92 = scmp.eq.s32.totalorder %s19, 0
    %p93 = por %p91, %p92
    %s95 = sadd.s32 %s94, 1
    %p98 = scmp.eq.s32.totalorder %s13, 1
    %p99 = scmp.ne.s32.totalorder %s94, %s96
    %p100 = scmp.eq.s32.totalorder %s13, 0
    %p101 = por %p99, %p100
    %p102 = scmp.ne.s32.totalorder %s94, %s96
    %p103 = scmp.eq.s32.totalorder %s18, 1
    %p104 = por %p102, %p103
    %p105 = scmp.ne.s32.totalorder %s96, %s97
    %p106 = scmp.eq.s32.totalorder %s18, 0
    %p107 = por %p105, %p106
    %p108 = scmp.ne.s32.totalorder %s96, %s97
    %p109 = scmp.eq.s32.totalorder %s19, 1
    %p110 = por %p108, %p109
    %p112 = scmp.ne.s32.totalorder %s97, %s111
    %p113 = scmp.eq.s32.totalorder %s19, 0
    %p114 = por %p112, %p113
    %s116 = sadd.s32 %s115, 1
    %p119 = scmp.eq.s32.totalorder %s13, 1
    %p120 = scmp.ne.s32.totalorder %s115, %s117
    %p121 = scmp.eq.s32.totalorder %s13, 0
    %p122 = por %p120, %p121
    %p123 = scmp.ne.s32.totalorder %s115, %s117
    %p124 = scmp.eq.s32.totalorder %s18, 1
    %p125 = por %p123, %p124
    %p126 = scmp.ne.s32.totalorder %s117, %s118
    %p127 = scmp.eq.s32.totalorder %s18, 0
    %p128 = por %p126, %p127
    %p129 = scmp.ne.s32.totalorder %s117, %s118
    %p130 = scmp.eq.s32.totalorder %s19, 1
    %p131 = por %p129, %p130
    %p133 = scmp.ne.s32.totalorder %s118, %s132
    %p134 = scmp.eq.s32.totalorder %s19, 0
    %p135 = por %p133, %p134
    %s136 = ssub.s32 %s13, %s20
    %p137 = scmp.eq.s32.totalorder %s136, 0
    %s139 = sadd.s32 %s138, 1
    %s140 = scalar_select %p137, %s138, %s139
    %p143 = pneg %p137
    %p144 = scmp.eq.s32.totalorder %s13, 1
    %p145 = por %p143, %p144
    %p146 = scmp.ne.s32.totalorder %s138, %s141
    %p147 = scmp.eq.s32.totalorder %s13, 0
    %p148 = por %p146, %p147
    %p149 = scmp.ne.s32.totalorder %s138, %s141
    %p150 = scmp.eq.s32.totalorder %s18, 1
    %p151 = por %p149, %p150
    %p152 = scmp.ne.s32.totalorder %s141, %s142
    %p153 = scmp.eq.s32.totalorder %s18, 0
    %p154 = por %p152, %p153
    %p155 = scmp.ne.s32.totalorder %s141, %s142
    %p156 = scmp.eq.s32.totalorder %s19, 1
    %p157 = por %p155, %p156
    %p159 = scmp.ne.s32.totalorder %s142, %s158
    %p160 = scmp.eq.s32.totalorder %s19, 0
    %p161 = por %p159, %p160
    %s162 = ssub.s32 %s13, %s20
    %p163 = scmp.eq.s32.totalorder %s162, 0
    %s165 = sadd.s32 %s164, 1
    %s166 = scalar_select %p163, %s164, %s165
    %p169 = pneg %p163
    %p170 = scmp.eq.s32.totalorder %s13, 1
    %p171 = por %p169, %p170
    %p172 = scmp.ne.s32.totalorder %s164, %s167
    %p173 = scmp.eq.s32.totalorder %s13, 0
    %p174 = por %p172, %p173
    %p175 = scmp.ne.s32.totalorder %s164, %s167
    %p176 = scmp.eq.s32.totalorder %s18, 1
    %p177 = por %p175, %p176
    %p178 = scmp.ne.s32.totalorder %s167, %s168
    %p179 = scmp.eq.s32.totalorder %s18, 0
    %p180 = por %p178, %p179
    %p181 = scmp.ne.s32.totalorder %s167, %s168
    %p182 = scmp.eq.s32.totalorder %s19, 1
    %p183 = por %p181, %p182
    %p185 = scmp.ne.s32.totalorder %s168, %s184
    %p186 = scmp.eq.s32.totalorder %s19, 0
    %p187 = por %p185, %p186
    %p188 = scmp.le.s32.totalorder 1, %s13
    %p189 = scmp.lt.s32.totalorder %s13, 3
    %p190 = pnand %p188, %p189
    %p191 = pneg %p190
    // Predicated region
    $region9: #{pconv_block_forward.1} parent=5 // pred_check
      _
    $region10: #{pconv_block_forward.1} parent=5 // pred_check_branch
      %193 = sbr.rel (%p190) target = $region12
    $region11: #{pconv_block_forward.1} parent=5 // pred_region
      %s194 = ssub.s32 %s13, 1
      // Predicated region
      $region13: #{pconv_block_forward.1} parent=11 // pred_check
        %p195 = pneg %p86
      $region14: #{pconv_block_forward.1} parent=11 // pred_check_branch
        %197 = sbr.rel (%p195) target = $region16
      $region15: #{pconv_block_forward.1} parent=11 // pred_region
        _
      $region16: #{pconv_block_forward.1} parent=11 // pred_fallthru
        _
      // Predicated region
      $region17: #{pconv_block_forward.1} parent=11 // pred_check
        %p198 = pneg %p107
      $region18: #{pconv_block_forward.1} parent=11 // pred_check_branch
        %200 = sbr.rel (%p198) target = $region20
      $region19: #{pconv_block_forward.1} parent=11 // pred_region
        _
      $region20: #{pconv_block_forward.1} parent=11 // pred_fallthru
        _
      // Predicated region
      $region21: #{pconv_block_forward.1} parent=11 // pred_check
        %p201 = pneg %p128
      $region22: #{pconv_block_forward.1} parent=11 // pred_check_branch
        %203 = sbr.rel (%p201) target = $region24
      $region23: #{pconv_block_forward.1} parent=11 // pred_region
        _
      $region24: #{pconv_block_forward.1} parent=11 // pred_fallthru
        _
    $region12: #{pconv_block_forward.1} parent=5 // pred_fallthru
      _
    %p204 = scmp.lt.s32.totalorder %s13, 2
    // Predicated region
    $region25: #{pconv_block_forward.1} parent=5 // pred_check
      %p205 = pneg %p204
    $region26: #{pconv_block_forward.1} parent=5 // pred_check_branch
      %207 = sbr.rel (%p205) target = $region28
    $region27: #{pconv_block_forward.1} parent=5 // pred_region
      // Predicated region
      $region29: #{pconv_block_forward.1} parent=27 // pred_check
        %p208 = pneg %p33
      $region30: #{pconv_block_forward.1} parent=27 // pred_check_branch
        %210 = sbr.rel (%p208) target = $region32
      $region31: #{pconv_block_forward.1} parent=27 // pred_region
        %p211 = scmp.lt.s32.totalorder %s13, 1
        %s212 = scalar_select %p211, %s13, 1
        %s213 = smul.addr %s212, 4
        %s214 = smul.addr %s213, 2
        %s215 = scalar_lea.vmem %s0, %s214
      $region32: #{pconv_block_forward.1} parent=27 // pred_fallthru
        _
      // Predicated region
      $region33: #{pconv_block_forward.1} parent=27 // pred_check
        %p216 = pneg %p59
      $region34: #{pconv_block_forward.1} parent=27 // pred_check_branch
        %218 = sbr.rel (%p216) target = $region36
      $region35: #{pconv_block_forward.1} parent=27 // pred_region
        %p219 = scmp.lt.s32.totalorder %s13, 1
        %s220 = scalar_select %p219, %s13, 1
        %s221 = smul.addr %s220, 4
        %s222 = scalar_lea.vmem %s1, %s221
      $region36: #{pconv_block_forward.1} parent=27 // pred_fallthru
        _
    $region28: #{pconv_block_forward.1} parent=5 // pred_fallthru
      _
    %p223 = scmp.le.s32.totalorder 1, %s13
    %p224 = scmp.lt.s32.totalorder %s13, 3
    %p225 = pnand %p223, %p224
    %p226 = pneg %p225
    // Predicated region
    $region37: #{pconv_block_forward.1} parent=5 // pred_check
      _
    $region38: #{pconv_block_forward.1} parent=5 // pred_check_branch
      %228 = sbr.rel (%p225) target = $region40
    $region39: #{pconv_block_forward.1} parent=5 // pred_region
      %s229 = ssub.s32 %s13, 1
      %p230 = scmp.lt.s32.totalorder %s18, 1
      %s231 = scalar_select %p230, %s18, 1
      %s232 = smul.addr %s231, 4
      %s233 = smul.addr %s232, 2
      %s234 = scalar_lea.vmem %s0, %s233
      %p235 = pneg %p39
      %p236 = pneg %p36
      %p237 = scmp.lt.s32.totalorder %s18, 1
      %s238 = scalar_select %p237, %s18, 1
      %s239 = smul.addr %s238, 4
      %s240 = scalar_lea.vmem %s1, %s239
      %p241 = pneg %p65
      %p242 = pneg %p62
      %p243 = pneg %p86
      %p244 = pneg %p83
      %p245 = pneg %p107
      %p246 = pneg %p104
      %p247 = pneg %p128
      %p248 = pneg %p125
      %p249 = pneg %p154
      %p250 = pneg %p151
      %p251 = scmp.lt.s32.totalorder %s18, 1
      %s252 = scalar_select %p251, %s18, 1
      %s253 = smul.addr %s252, 3
      %s254 = smul.addr %s253, 4
      %s255 = scalar_lea.vmem %s5, %s254
      %p256 = pneg %p180
      %p257 = pneg %p177
      %p258 = scmp.lt.s32.totalorder %s18, 1
      %s259 = scalar_select %p258, %s18, 1
      %s260 = smul.addr %s259, 3
      %s261 = scalar_lea.vmem %s6, %s260
      %p262 = scmp.lt.s32.totalorder %s18, 1
      %s263 = scalar_select %p262, %s18, 1
      %s264 = smul.addr %s263, 4
      %s265 = smul.addr %s264, 2
      %s266 = scalar_lea.vmem %s0, %s265
      %p267 = scmp.lt.s32.totalorder %s18, 1
      %s268 = scalar_select %p267, %s18, 1
      %s269 = smul.addr %s268, 4
      %s270 = scalar_lea.vmem %s1, %s269
      %p271 = scmp.lt.s32.totalorder %s18, 1
      %s272 = scalar_select %p271, %s18, 1
      %s273 = smul.addr %s272, 3
      %s274 = smul.addr %s273, 4
      %s275 = scalar_lea.vmem %s5, %s274
      %p276 = scmp.lt.s32.totalorder %s18, 1
      %s277 = scalar_select %p276, %s18, 1
      %s278 = smul.addr %s277, 3
      %s279 = scalar_lea.vmem %s6, %s278
      %v281 = vld [vmem:[%s2] sm:$0xf]
      %v282 = vld [vmem:[%s266] sm:$0x3f]
      %v283 = vld [vmem:[%s270] sm:$0x7]
      %v284 = vadd.f32 %v283, 0.0
      %s285 = scalar_lea.vmem %s2, 4
      %v286 = vld [vmem:[%s285] sm:$0xf]
      %v287 = vld [vmem:[%s266] sm:$0xff]
      %289 = vst [vmem:[#allocation1] ss:$4 sm:$0xff] %v287
      %v290 = vld.sshfl [vmem:[#allocation1] sm:$0xff pattern:$0x73625140]
      %v292 = vld.sshfl [vmem:[#allocation1 + $0x8] sm:$0xff pattern:$0x73625140]
      %v294 = vld.sshfl [vmem:[#allocation1 + $0x10] sm:$0xff pattern:$0x73625140]
      %v296 = vld.sshfl [vmem:[#allocation1 + $0x18] sm:$0xff pattern:$0x73625140]
      %298 = vrot.lane.b32.xlu0 %v290, 127
      %v299 = vpop.permute.xlu0 %298
      %300 = vrot.lane.b32.xlu0 %v292, 127
      %v301 = vpop.permute.xlu0 %300
      %302 = vrot.lane.b32.xlu0 %v294, 127
      %v303 = vpop.permute.xlu0 %302
      %304 = vrot.lane.b32.xlu0 %v296, 127
      %v305 = vpop.permute.xlu0 %304
      %vm306 = vcmask 1039360
      %v307 = vsel %vm306, %v299, %v301
      %v308 = vsel %vm306, %v301, %v303
      %v309 = vsel %vm306, %v303, %v305
      %vm310 = vcmask 31744
      %v312 = vsel %vm310, %v286, 0
      %vm314 = vcmask 1041408
      %v316 = vsel %vm314, %v307, 0
      %v319 = vsel %vm314, %v308, 0
      %v322 = vsel %vm314, %v309, 0
      %324 = vmatpush.bf16.msra.mxu0 0
      %325 = vmatpush.bf16.msra.mxu0 0
      %326 = vmatpush.bf16.msra.mxu0 0
      %327 = vmatpush.bf16.msra.mxu0 0
      %328 = vmatpush.bf16.msra.mxu0 0
      %329 = vmatpush.bf16.msra.mxu0 0
      %330 = vmatpush.bf16.msra.mxu0 0
      %331 = vmatpush.bf16.msra.mxu0 %v316
      %332 = vmatmul.bf16.gmra.mxu0 %v312
      %v333 = vpop.f32.mrf.mxu0
      %v334 = vadd.f32 0.0, %v333
      %v335 = vpop.f32.mrf.mxu0
      %336 = vdwg.mxu0
      %337 = vmatpush.bf16.msra.mxu0 0
      %338 = vmatpush.bf16.msra.mxu0 0
      %339 = vmatpush.bf16.msra.mxu0 0
      %340 = vmatpush.bf16.msra.mxu0 0
      %341 = vmatpush.bf16.msra.mxu0 0
      %342 = vmatpush.bf16.msra.mxu0 0
      %343 = vmatpush.bf16.msra.mxu0 0
      %344 = vmatpush.bf16.msra.mxu0 %v319
      %345 = vmatmul.bf16.gmra.mxu0 %v312
      %v346 = vpop.f32.mrf.mxu0
      %v347 = vadd.f32 0.0, %v346
      %v348 = vpop.f32.mrf.mxu0
      %349 = vdwg.mxu0
      %350 = vmatpush.bf16.msra.mxu0 0
      %351 = vmatpush.bf16.msra.mxu0 0
      %352 = vmatpush.bf16.msra.mxu0 0
      %353 = vmatpush.bf16.msra.mxu0 0
      %354 = vmatpush.bf16.msra.mxu0 0
      %355 = vmatpush.bf16.msra.mxu0 0
      %356 = vmatpush.bf16.msra.mxu0 0
      %357 = vmatpush.bf16.msra.mxu0 %v322
      %358 = vmatmul.bf16.gmra.mxu0 %v312
      %v359 = vpop.f32.mrf.mxu0
      %v360 = vadd.f32 0.0, %v359
      %v361 = vpop.f32.mrf.mxu0
      %362 = vdwg.mxu0
      %364 = vst [vmem:[#allocation1] ss:$4 sm:$0xff] %v282
      %v365 = vld.sshfl [vmem:[#allocation1] sm:$0xff pattern:$0x73625140]
      %v366 = vld.sshfl [vmem:[#allocation1 + $0x8] sm:$0xff pattern:$0x73625140]
      %v367 = vld.sshfl [vmem:[#allocation1 + $0x10] sm:$0xff pattern:$0x73625140]
      %v369 = vsel %vm310, %v281, 0
      %v371 = vsel %vm314, %v365, 0
      %v373 = vsel %vm314, %v366, 0
      %v375 = vsel %vm314, %v367, 0
      %377 = vmatpush.bf16.msra.mxu0 0
      %378 = vmatpush.bf16.msra.mxu0 0
      %379 = vmatpush.bf16.msra.mxu0 0
      %380 = vmatpush.bf16.msra.mxu0 0
      %381 = vmatpush.bf16.msra.mxu0 0
      %382 = vmatpush.bf16.msra.mxu0 0
      %383 = vmatpush.bf16.msra.mxu0 0
      %384 = vmatpush.bf16.msra.mxu0 %v371
      %385 = vmatmul.bf16.gmra.mxu0 %v369
      %v386 = vpop.f32.mrf.mxu0
      %v387 = vadd.f32 %v334, %v386
      %v388 = vpop.f32.mrf.mxu0
      %389 = vdwg.mxu0
      %390 = vmatpush.bf16.msra.mxu0 0
      %391 = vmatpush.bf16.msra.mxu0 0
      %392 = vmatpush.bf16.msra.mxu0 0
      %393 = vmatpush.bf16.msra.mxu0 0
      %394 = vmatpush.bf16.msra.mxu0 0
      %395 = vmatpush.bf16.msra.mxu0 0
      %396 = vmatpush.bf16.msra.mxu0 0
      %397 = vmatpush.bf16.msra.mxu0 %v373
      %398 = vmatmul.bf16.gmra.mxu0 %v369
      %v399 = vpop.f32.mrf.mxu0
      %v400 = vadd.f32 %v347, %v399
      %v401 = vpop.f32.mrf.mxu0
      %402 = vdwg.mxu0
      %403 = vmatpush.bf16.msra.mxu0 0
      %404 = vmatpush.bf16.msra.mxu0 0
      %405 = vmatpush.bf16.msra.mxu0 0
      %406 = vmatpush.bf16.msra.mxu0 0
      %407 = vmatpush.bf16.msra.mxu0 0
      %408 = vmatpush.bf16.msra.mxu0 0
      %409 = vmatpush.bf16.msra.mxu0 0
      %410 = vmatpush.bf16.msra.mxu0 %v375
      %411 = vmatmul.bf16.gmra.mxu0 %v369
      %v412 = vpop.f32.mrf.mxu0
      %v413 = vadd.f32 %v360, %v412
      %v414 = vpop.f32.mrf.mxu0
      %415 = vdwg.mxu0
      %v416 = vld [vmem:[%s270] sm:$0xf]
      %418 = vrot.lane.b32.xlu0 %v416, 127
      %v419 = vpop.permute.xlu0 %418
      %v420 = vrot.slane %v419, 1
      %vm421 = vcmask 1039360
      %v422 = vsel %vm421, %v419, %v420
      %v424 = vadd.f32 %v284, %v422
      %s425 = scalar_lea.vmem %s2, 8
      %v426 = vld [vmem:[%s425] sm:$0xf]
      %v427 = vld [vmem:[%s266] sm:$0xff]
      %429 = vst [vmem:[#allocation1] ss:$4 sm:$0xff] %v427
      %v430 = vld.sshfl [vmem:[#allocation1] sm:$0xff pattern:$0x73625140]
      %v432 = vld.sshfl [vmem:[#allocation1 + $0x8] sm:$0xff pattern:$0x73625140]
      %v434 = vld.sshfl [vmem:[#allocation1 + $0x10] sm:$0xff pattern:$0x73625140]
      %v436 = vld.sshfl [vmem:[#allocation1 + $0x18] sm:$0xff pattern:$0x73625140]
      %438 = vrot.lane.b32.xlu0 %v430, 126
      %v439 = vpop.permute.xlu0 %438
      %440 = vrot.lane.b32.xlu0 %v432, 126
      %v441 = vpop.permute.xlu0 %440
      %442 = vrot.lane.b32.xlu0 %v434, 126
      %v443 = vpop.permute.xlu0 %442
      %444 = vrot.lane.b32.xlu0 %v436, 126
      %v445 = vpop.permute.xlu0 %444
      %vm446 = vcmask 1031168
      %v447 = vsel %vm446, %v439, %v441
      %v448 = vsel %vm446, %v441, %v443
      %v449 = vsel %vm446, %v443, %v445
      %v451 = vsel %vm310, %v426, 0
      %v454 = vsel %vm314, %v447, 0
      %v457 = vsel %vm314, %v448, 0
      %v460 = vsel %vm314, %v449, 0
      %462 = vmatpush.bf16.msra.mxu0 0
      %463 = vmatpush.bf16.msra.mxu0 0
      %464 = vmatpush.bf16.msra.mxu0 0
      %465 = vmatpush.bf16.msra.mxu0 0
      %466 = vmatpush.bf16.msra.mxu0 0
      %467 = vmatpush.bf16.msra.mxu0 0
      %468 = vmatpush.bf16.msra.mxu0 0
      %469 = vmatpush.bf16.msra.mxu0 %v454
      %470 = vmatmul.bf16.gmra.mxu0 %v451
      %v471 = vpop.f32.mrf.mxu0
      %v472 = vadd.f32 0.0, %v471
      %v473 = vpop.f32.mrf.mxu0
      %474 = vdwg.mxu0
      %475 = vmatpush.bf16.msra.mxu0 0
      %476 = vmatpush.bf16.msra.mxu0 0
      %477 = vmatpush.bf16.msra.mxu0 0
      %478 = vmatpush.bf16.msra.mxu0 0
      %479 = vmatpush.bf16.msra.mxu0 0
      %480 = vmatpush.bf16.msra.mxu0 0
      %481 = vmatpush.bf16.msra.mxu0 0
      %482 = vmatpush.bf16.msra.mxu0 %v457
      %483 = vmatmul.bf16.gmra.mxu0 %v451
      %v484 = vpop.f32.mrf.mxu0
      %v485 = vadd.f32 0.0, %v484
      %v486 = vpop.f32.mrf.mxu0
      %487 = vdwg.mxu0
      %488 = vmatpush.bf16.msra.mxu0 0
      %489 = vmatpush.bf16.msra.mxu0 0
      %490 = vmatpush.bf16.msra.mxu0 0
      %491 = vmatpush.bf16.msra.mxu0 0
      %492 = vmatpush.bf16.msra.mxu0 0
      %493 = vmatpush.bf16.msra.mxu0 0
      %494 = vmatpush.bf16.msra.mxu0 0
      %495 = vmatpush.bf16.msra.mxu0 %v460
      %496 = vmatmul.bf16.gmra.mxu0 %v451
      %v497 = vpop.f32.mrf.mxu0
      %v498 = vadd.f32 0.0, %v497
      %v499 = vpop.f32.mrf.mxu0
      %500 = vdwg.mxu0
      %v501 = vadd.f32 %v387, %v472
      %v502 = vadd.f32 %v400, %v485
      %v503 = vadd.f32 %v413, %v498
      %v504 = vld [vmem:[%s270] sm:$0xf]
      %506 = vrot.lane.b32.xlu0 %v504, 126
      %v507 = vpop.permute.xlu0 %506
      %v508 = vrot.slane %v507, 1
      %vm509 = vcmask 1031168
      %v510 = vsel %vm509, %v507, %v508
      %v512 = vadd.f32 %v424, %v510
      %s513 = scalar_lea.vmem %s2, 12
      %v514 = vld [vmem:[%s513] sm:$0xf]
      %v515 = vld [vmem:[%s266] sm:$0xff]
      %517 = vst [vmem:[#allocation1] ss:$4 sm:$0xff] %v515
      %v518 = vld.sshfl [vmem:[#allocation1] sm:$0xff pattern:$0x73625140]
      %v520 = vld.sshfl [vmem:[#allocation1 + $0x8] sm:$0xff pattern:$0x73625140]
      %v522 = vld.sshfl [vmem:[#allocation1 + $0x10] sm:$0xff pattern:$0x73625140]
      %v524 = vld.sshfl [vmem:[#allocation1 + $0x18] sm:$0xff pattern:$0x73625140]
      %526 = vrot.lane.b32.xlu0 %v518, 110
      %v527 = vpop.permute.xlu0 %526
      %528 = vrot.lane.b32.xlu0 %v520, 110
      %v529 = vpop.permute.xlu0 %528
      %530 = vrot.lane.b32.xlu0 %v522, 110
      %v531 = vpop.permute.xlu0 %530
      %532 = vrot.lane.b32.xlu0 %v524, 110
      %v533 = vpop.permute.xlu0 %532
      %vm534 = vcmask 900096
      %v535 = vsel %vm534, %v527, %v529
      %v536 = vsel %vm534, %v529, %v531
      %v537 = vsel %vm534, %v531, %v533
      %v539 = vsel %vm310, %v514, 0
      %v542 = vsel %vm314, %v535, 0
      %v545 = vsel %vm314, %v536, 0
      %v548 = vsel %vm314, %v537, 0
      %550 = vmatpush.bf16.msra.mxu0 0
      %551 = vmatpush.bf16.msra.mxu0 0
      %552 = vmatpush.bf16.msra.mxu0 0
      %553 = vmatpush.bf16.msra.mxu0 0
      %554 = vmatpush.bf16.msra.mxu0 0
      %555 = vmatpush.bf16.msra.mxu0 0
      %556 = vmatpush.bf16.msra.mxu0 0
      %557 = vmatpush.bf16.msra.mxu0 %v542
      %558 = vmatmul.bf16.gmra.mxu0 %v539
      %v559 = vpop.f32.mrf.mxu0
      %v560 = vadd.f32 0.0, %v559
      %v561 = vpop.f32.mrf.mxu0
      %562 = vdwg.mxu0
      %563 = vmatpush.bf16.msra.mxu0 0
      %564 = vmatpush.bf16.msra.mxu0 0
      %565 = vmatpush.bf16.msra.mxu0 0
      %566 = vmatpush.bf16.msra.mxu0 0
      %567 = vmatpush.bf16.msra.mxu0 0
      %568 = vmatpush.bf16.msra.mxu0 0
      %569 = vmatpush.bf16.msra.mxu0 0
      %570 = vmatpush.bf16.msra.mxu0 %v545
      %571 = vmatmul.bf16.gmra.mxu0 %v539
      %v572 = vpop.f32.mrf.mxu0
      %v573 = vadd.f32 0.0, %v572
      %v574 = vpop.f32.mrf.mxu0
      %575 = vdwg.mxu0
      %576 = vmatpush.bf16.msra.mxu0 0
      %577 = vmatpush.bf16.msra.mxu0 0
      %578 = vmatpush.bf16.msra.mxu0 0
      %579 = vmatpush.bf16.msra.mxu0 0
      %580 = vmatpush.bf16.msra.mxu0 0
      %581 = vmatpush.bf16.msra.mxu0 0
      %582 = vmatpush.bf16.msra.mxu0 0
      %583 = vmatpush.bf16.msra.mxu0 %v548
      %584 = vmatmul.bf16.gmra.mxu0 %v539
      %v585 = vpop.f32.mrf.mxu0
      %v586 = vadd.f32 0.0, %v585
      %v587 = vpop.f32.mrf.mxu0
      %588 = vdwg.mxu0
      %v589 = vadd.f32 %v501, %v560
      %v590 = vadd.f32 %v502, %v573
      %v591 = vadd.f32 %v503, %v586
      %v592 = vld [vmem:[%s270] sm:$0xf]
      %594 = vrot.lane.b32.xlu0 %v592, 110
      %v595 = vpop.permute.xlu0 %594
      %v596 = vrot.slane %v595, 1
      %vm597 = vcmask 900096
      %v598 = vsel %vm597, %v595, %v596
      %v600 = vadd.f32 %v512, %v598
      %s601 = scalar_lea.vmem %s2, 16
      %v602 = vld [vmem:[%s601] sm:$0xf]
      %v603 = vld [vmem:[%s266] sm:$0xff]
      %605 = vst [vmem:[#allocation1] ss:$4 sm:$0xff] %v603
      %v606 = vld.sshfl [vmem:[#allocation1] sm:$0xff pattern:$0x73625140]
      %v608 = vld.sshfl [vmem:[#allocation1 + $0x8] sm:$0xff pattern:$0x73625140]
      %v610 = vld.sshfl [vmem:[#allocation1 + $0x10] sm:$0xff pattern:$0x73625140]
      %v612 = vld.sshfl [vmem:[#allocation1 + $0x18] sm:$0xff pattern:$0x73625140]
      %614 = vrot.lane.b32.xlu0 %v606, 109
      %v615 = vpop.permute.xlu0 %614
      %616 = vrot.lane.b32.xlu0 %v608, 109
      %v617 = vpop.permute.xlu0 %616
      %618 = vrot.lane.b32.xlu0 %v610, 109
      %v619 = vpop.permute.xlu0 %618
      %620 = vrot.lane.b32.xlu0 %v612, 109
      %v621 = vpop.permute.xlu0 %620
      %vm622 = vcmask 891904
      %v623 = vsel %vm622, %v615, %v617
      %v624 = vsel %vm622, %v617, %v619
      %v625 = vsel %vm622, %v619, %v621
      %v627 = vsel %vm310, %v602, 0
      %v630 = vsel %vm314, %v623, 0
      %v633 = vsel %vm314, %v624, 0
      %v636 = vsel %vm314, %v625, 0
      %638 = vmatpush.bf16.msra.mxu0 0
      %639 = vmatpush.bf16.msra.mxu0 0
      %640 = vmatpush.bf16.msra.mxu0 0
      %641 = vmatpush.bf16.msra.mxu0 0
      %642 = vmatpush.bf16.msra.mxu0 0
      %643 = vmatpush.bf16.msra.mxu0 0
      %644 = vmatpush.bf16.msra.mxu0 0
      %645 = vmatpush.bf16.msra.mxu0 %v630
      %646 = vmatmul.bf16.gmra.mxu0 %v627
      %v647 = vpop.f32.mrf.mxu0
      %v648 = vadd.f32 0.0, %v647
      %v649 = vpop.f32.mrf.mxu0
      %650 = vdwg.mxu0
      %651 = vmatpush.bf16.msra.mxu0 0
      %652 = vmatpush.bf16.msra.mxu0 0
      %653 = vmatpush.bf16.msra.mxu0 0
      %654 = vmatpush.bf16.msra.mxu0 0
      %655 = vmatpush.bf16.msra.mxu0 0
      %656 = vmatpush.bf16.msra.mxu0 0
      %657 = vmatpush.bf16.msra.mxu0 0
      %658 = vmatpush.bf16.msra.mxu0 %v633
      %659 = vmatmul.bf16.gmra.mxu0 %v627
      %v660 = vpop.f32.mrf.mxu0
      %v661 = vadd.f32 0.0, %v660
      %v662 = vpop.f32.mrf.mxu0
      %663 = vdwg.mxu0
      %664 = vmatpush.bf16.msra.mxu0 0
      %665 = vmatpush.bf16.msra.mxu0 0
      %666 = vmatpush.bf16.msra.mxu0 0
      %667 = vmatpush.bf16.msra.mxu0 0
      %668 = vmatpush.bf16.msra.mxu0 0
      %669 = vmatpush.bf16.msra.mxu0 0
      %670 = vmatpush.bf16.msra.mxu0 0
      %671 = vmatpush.bf16.msra.mxu0 %v636
      %672 = vmatmul.bf16.gmra.mxu0 %v627
      %v673 = vpop.f32.mrf.mxu0
      %v674 = vadd.f32 0.0, %v673
      %v675 = vpop.f32.mrf.mxu0
      %676 = vdwg.mxu0
      %v677 = vadd.f32 %v589, %v648
      %v678 = vadd.f32 %v590, %v661
      %v679 = vadd.f32 %v591, %v674
      %v680 = vld [vmem:[%s270] sm:$0xf]
      %682 = vrot.lane.b32.xlu0 %v680, 109
      %v683 = vpop.permute.xlu0 %682
      %v684 = vrot.slane %v683, 1
      %vm685 = vcmask 891904
      %v686 = vsel %vm685, %v683, %v684
      %v688 = vadd.f32 %v600, %v686
      %s689 = scalar_lea.vmem %s2, 20
      %v690 = vld [vmem:[%s689] sm:$0xf]
      %v691 = vld [vmem:[%s266] sm:$0xff]
      %693 = vst [vmem:[#allocation1] ss:$4 sm:$0xff] %v691
      %v694 = vld.sshfl [vmem:[#allocation1] sm:$0xff pattern:$0x73625140]
      %v696 = vld.sshfl [vmem:[#allocation1 + $0x8] sm:$0xff pattern:$0x73625140]
      %v698 = vld.sshfl [vmem:[#allocation1 + $0x10] sm:$0xff pattern:$0x73625140]
      %v700 = vld.sshfl [vmem:[#allocation1 + $0x18] sm:$0xff pattern:$0x73625140]
      %702 = vrot.lane.b32.xlu0 %v694, 108
      %v703 = vpop.permute.xlu0 %702
      %704 = vrot.lane.b32.xlu0 %v696, 108
      %v705 = vpop.permute.xlu0 %704
      %706 = vrot.lane.b32.xlu0 %v698, 108
      %v707 = vpop.permute.xlu0 %706
      %708 = vrot.lane.b32.xlu0 %v700, 108
      %v709 = vpop.permute.xlu0 %708
      %vm710 = vcmask 883712
      %v711 = vsel %vm710, %v703, %v705
      %v712 = vsel %vm710, %v705, %v707
      %v713 = vsel %vm710, %v707, %v709
      %v715 = vsel %vm310, %v690, 0
      %v718 = vsel %vm314, %v711, 0
      %v721 = vsel %vm314, %v712, 0
      %v724 = vsel %vm314, %v713, 0
      %726 = vmatpush.bf16.msra.mxu0 0
      %727 = vmatpush.bf16.msra.mxu0 0
      %728 = vmatpush.bf16.msra.mxu0 0
      %729 = vmatpush.bf16.msra.mxu0 0
      %730 = vmatpush.bf16.msra.mxu0 0
      %731 = vmatpush.bf16.msra.mxu0 0
      %732 = vmatpush.bf16.msra.mxu0 0
      %733 = vmatpush.bf16.msra.mxu0 %v718
      %734 = vmatmul.bf16.gmra.mxu0 %v715
      %v735 = vpop.f32.mrf.mxu0
      %v736 = vadd.f32 0.0, %v735
      %v737 = vpop.f32.mrf.mxu0
      %738 = vdwg.mxu0
      %739 = vmatpush.bf16.msra.mxu0 0
      %740 = vmatpush.bf16.msra.mxu0 0
      %741 = vmatpush.bf16.msra.mxu0 0
      %742 = vmatpush.bf16.msra.mxu0 0
      %743 = vmatpush.bf16.msra.mxu0 0
      %744 = vmatpush.bf16.msra.mxu0 0
      %745 = vmatpush.bf16.msra.mxu0 0
      %746 = vmatpush.bf16.msra.mxu0 %v721
      %747 = vmatmul.bf16.gmra.mxu0 %v715
      %v748 = vpop.f32.mrf.mxu0
      %v749 = vadd.f32 0.0, %v748
      %v750 = vpop.f32.mrf.mxu0
      %751 = vdwg.mxu0
      %752 = vmatpush.bf16.msra.mxu0 0
      %753 = vmatpush.bf16.msra.mxu0 0
      %754 = vmatpush.bf16.msra.mxu0 0
      %755 = vmatpush.bf16.msra.mxu0 0
      %756 = vmatpush.bf16.msra.mxu0 0
      %757 = vmatpush.bf16.msra.mxu0 0
      %758 = vmatpush.bf16.msra.mxu0 0
      %759 = vmatpush.bf16.msra.mxu0 %v724
      %760 = vmatmul.bf16.gmra.mxu0 %v715
      %v761 = vpop.f32.mrf.mxu0
      %v762 = vadd.f32 0.0, %v761
      %v763 = vpop.f32.mrf.mxu0
      %764 = vdwg.mxu0
      %v765 = vadd.f32 %v677, %v736
      %v766 = vadd.f32 %v678, %v749
      %v767 = vadd.f32 %v679, %v762
      %v768 = vld [vmem:[%s270] sm:$0xf]
      %770 = vrot.lane.b32.xlu0 %v768, 108
      %v771 = vpop.permute.xlu0 %770
      %v772 = vrot.slane %v771, 1
      %vm773 = vcmask 883712
      %v774 = vsel %vm773, %v771, %v772
      %v776 = vadd.f32 %v688, %v774
      %s777 = scalar_lea.vmem %s2, 24
      %v778 = vld [vmem:[%s777] sm:$0xf]
      %v779 = vld [vmem:[%s266] sm:$0xff]
      %781 = vst [vmem:[#allocation1] ss:$4 sm:$0xff] %v779
      %v782 = vld.sshfl [vmem:[#allocation1] sm:$0xff pattern:$0x73625140]
      %v784 = vld.sshfl [vmem:[#allocation1 + $0x8] sm:$0xff pattern:$0x73625140]
      %v786 = vld.sshfl [vmem:[#allocation1 + $0x10] sm:$0xff pattern:$0x73625140]
      %v788 = vld.sshfl [vmem:[#allocation1 + $0x18] sm:$0xff pattern:$0x73625140]
      %790 = vrot.lane.b32.xlu0 %v782, 92
      %v791 = vpop.permute.xlu0 %790
      %792 = vrot.lane.b32.xlu0 %v784, 92
      %v793 = vpop.permute.xlu0 %792
      %794 = vrot.lane.b32.xlu0 %v786, 92
      %v795 = vpop.permute.xlu0 %794
      %796 = vrot.lane.b32.xlu0 %v788, 92
      %v797 = vpop.permute.xlu0 %796
      %vm798 = vcmask 752640
      %v799 = vsel %vm798, %v791, %v793
      %v800 = vsel %vm798, %v793, %v795
      %v801 = vsel %vm798, %v795, %v797
      %v803 = vsel %vm310, %v778, 0
      %v806 = vsel %vm314, %v799, 0
      %v809 = vsel %vm314, %v800, 0
      %v812 = vsel %vm314, %v801, 0
      %814 = vmatpush.bf16.msra.mxu0 0
      %815 = vmatpush.bf16.msra.mxu0 0
      %816 = vmatpush.bf16.msra.mxu0 0
      %817 = vmatpush.bf16.msra.mxu0 0
      %818 = vmatpush.bf16.msra.mxu0 0
      %819 = vmatpush.bf16.msra.mxu0 0
      %820 = vmatpush.bf16.msra.mxu0 0
      %821 = vmatpush.bf16.msra.mxu0 %v806
      %822 = vmatmul.bf16.gmra.mxu0 %v803
      %v823 = vpop.f32.mrf.mxu0
      %v824 = vadd.f32 0.0, %v823
      %v825 = vpop.f32.mrf.mxu0
      %826 = vdwg.mxu0
      %827 = vmatpush.bf16.msra.mxu0 0
      %828 = vmatpush.bf16.msra.mxu0 0
      %829 = vmatpush.bf16.msra.mxu0 0
      %830 = vmatpush.bf16.msra.mxu0 0
      %831 = vmatpush.bf16.msra.mxu0 0
      %832 = vmatpush.bf16.msra.mxu0 0
      %833 = vmatpush.bf16.msra.mxu0 0
      %834 = vmatpush.bf16.msra.mxu0 %v809
      %835 = vmatmul.bf16.gmra.mxu0 %v803
      %v836 = vpop.f32.mrf.mxu0
      %v837 = vadd.f32 0.0, %v836
      %v838 = vpop.f32.mrf.mxu0
      %839 = vdwg.mxu0
      %840 = vmatpush.bf16.msra.mxu0 0
      %841 = vmatpush.bf16.msra.mxu0 0
      %842 = vmatpush.bf16.msra.mxu0 0
      %843 = vmatpush.bf16.msra.mxu0 0
      %844 = vmatpush.bf16.msra.mxu0 0
      %845 = vmatpush.bf16.msra.mxu0 0
      %846 = vmatpush.bf16.msra.mxu0 0
      %847 = vmatpush.bf16.msra.mxu0 %v812
      %848 = vmatmul.bf16.gmra.mxu0 %v803
      %v849 = vpop.f32.mrf.mxu0
      %v850 = vadd.f32 0.0, %v849
      %v851 = vpop.f32.mrf.mxu0
      %852 = vdwg.mxu0
      %v853 = vadd.f32 %v765, %v824
      %v854 = vadd.f32 %v766, %v837
      %v855 = vadd.f32 %v767, %v850
      %v856 = vld [vmem:[%s270] sm:$0xf]
      %858 = vrot.lane.b32.xlu0 %v856, 92
      %v859 = vpop.permute.xlu0 %858
      %v860 = vrot.slane %v859, 1
      %vm861 = vcmask 752640
      %v862 = vsel %vm861, %v859, %v860
      %v864 = vadd.f32 %v776, %v862
      %s865 = scalar_lea.vmem %s2, 28
      %v866 = vld [vmem:[%s865] sm:$0xf]
      %v867 = vld [vmem:[%s266] sm:$0xff]
      %869 = vst [vmem:[#allocation1] ss:$4 sm:$0xff] %v867
      %v870 = vld.sshfl [vmem:[#allocation1] sm:$0xff pattern:$0x73625140]
      %v872 = vld.sshfl [vmem:[#allocation1 + $0x8] sm:$0xff pattern:$0x73625140]
      %v874 = vld.sshfl [vmem:[#allocation1 + $0x10] sm:$0xff pattern:$0x73625140]
      %v876 = vld.sshfl [vmem:[#allocation1 + $0x18] sm:$0xff pattern:$0x73625140]
      %878 = vrot.lane.b32.xlu0 %v870, 91
      %v879 = vpop.permute.xlu0 %878
      %880 = vrot.lane.b32.xlu0 %v872, 91
      %v881 = vpop.permute.xlu0 %880
      %882 = vrot.lane.b32.xlu0 %v874, 91
      %v883 = vpop.permute.xlu0 %882
      %884 = vrot.lane.b32.xlu0 %v876, 91
      %v885 = vpop.permute.xlu0 %884
      %vm886 = vcmask 744448
      %v887 = vsel %vm886, %v879, %v881
      %v888 = vsel %vm886, %v881, %v883
      %v889 = vsel %vm886, %v883, %v885
      %v891 = vsel %vm310, %v866, 0
      %v894 = vsel %vm314, %v887, 0
      %v897 = vsel %vm314, %v888, 0
      %v900 = vsel %vm314, %v889, 0
      %902 = vmatpush.bf16.msra.mxu0 0
      %903 = vmatpush.bf16.msra.mxu0 0
      %904 = vmatpush.bf16.msra.mxu0 0
      %905 = vmatpush.bf16.msra.mxu0 0
      %906 = vmatpush.bf16.msra.mxu0 0
      %907 = vmatpush.bf16.msra.mxu0 0
      %908 = vmatpush.bf16.msra.mxu0 0
      %909 = vmatpush.bf16.msra.mxu0 %v894
      %910 = vmatmul.bf16.gmra.mxu0 %v891
      %v911 = vpop.f32.mrf.mxu0
      %v912 = vadd.f32 0.0, %v911
      %v913 = vpop.f32.mrf.mxu0
      %914 = vdwg.mxu0
      %915 = vmatpush.bf16.msra.mxu0 0
      %916 = vmatpush.bf16.msra.mxu0 0
      %917 = vmatpush.bf16.msra.mxu0 0
      %918 = vmatpush.bf16.msra.mxu0 0
      %919 = vmatpush.bf16.msra.mxu0 0
      %920 = vmatpush.bf16.msra.mxu0 0
      %921 = vmatpush.bf16.msra.mxu0 0
      %922 = vmatpush.bf16.msra.mxu0 %v897
      %923 = vmatmul.bf16.gmra.mxu0 %v891
      %v924 = vpop.f32.mrf.mxu0
      %v925 = vadd.f32 0.0, %v924
      %v926 = vpop.f32.mrf.mxu0
      %927 = vdwg.mxu0
      %928 = vmatpush.bf16.msra.mxu0 0
      %929 = vmatpush.bf16.msra.mxu0 0
      %930 = vmatpush.bf16.msra.mxu0 0
      %931 = vmatpush.bf16.msra.mxu0 0
      %932 = vmatpush.bf16.msra.mxu0 0
      %933 = vmatpush.bf16.msra.mxu0 0
      %934 = vmatpush.bf16.msra.mxu0 0
      %935 = vmatpush.bf16.msra.mxu0 %v900
      %936 = vmatmul.bf16.gmra.mxu0 %v891
      %v937 = vpop.f32.mrf.mxu0
      %v938 = vadd.f32 0.0, %v937
      %v939 = vpop.f32.mrf.mxu0
      %940 = vdwg.mxu0
      %v941 = vadd.f32 %v853, %v912
      %v942 = vadd.f32 %v854, %v925
      %v943 = vadd.f32 %v855, %v938
      %v944 = vld [vmem:[%s270] sm:$0xf]
      %946 = vrot.lane.b32.xlu0 %v944, 91
      %v947 = vpop.permute.xlu0 %946
      %v948 = vrot.slane %v947, 1
      %vm949 = vcmask 744448
      %v950 = vsel %vm949, %v947, %v948
      %v952 = vadd.f32 %v864, %v950
      %s953 = scalar_lea.vmem %s2, 32
      %v954 = vld [vmem:[%s953] sm:$0xf]
      %v955 = vld [vmem:[%s266] sm:$0xff]
      %957 = vst [vmem:[#allocation1] ss:$4 sm:$0xff] %v955
      %v958 = vld.sshfl [vmem:[#allocation1] sm:$0xff pattern:$0x73625140]
      %v960 = vld.sshfl [vmem:[#allocation1 + $0x8] sm:$0xff pattern:$0x73625140]
      %v962 = vld.sshfl [vmem:[#allocation1 + $0x10] sm:$0xff pattern:$0x73625140]
      %v964 = vld.sshfl [vmem:[#allocation1 + $0x18] sm:$0xff pattern:$0x73625140]
      %966 = vrot.lane.b32.xlu0 %v958, 90
      %v967 = vpop.permute.xlu0 %966
      %968 = vrot.lane.b32.xlu0 %v960, 90
      %v969 = vpop.permute.xlu0 %968
      %970 = vrot.lane.b32.xlu0 %v962, 90
      %v971 = vpop.permute.xlu0 %970
      %972 = vrot.lane.b32.xlu0 %v964, 90
      %v973 = vpop.permute.xlu0 %972
      %vm974 = vcmask 736256
      %v975 = vsel %vm974, %v967, %v969
      %v976 = vsel %vm974, %v969, %v971
      %v977 = vsel %vm974, %v971, %v973
      %v979 = vsel %vm310, %v954, 0
      %v982 = vsel %vm314, %v975, 0
      %v985 = vsel %vm314, %v976, 0
      %v988 = vsel %vm314, %v977, 0
      %990 = vmatpush.bf16.msra.mxu0 0
      %991 = vmatpush.bf16.msra.mxu0 0
      %992 = vmatpush.bf16.msra.mxu0 0
      %993 = vmatpush.bf16.msra.mxu0 0
      %994 = vmatpush.bf16.msra.mxu0 0
      %995 = vmatpush.bf16.msra.mxu0 0
      %996 = vmatpush.bf16.msra.mxu0 0
      %997 = vmatpush.bf16.msra.mxu0 %v982
      %998 = vmatmul.bf16.gmra.mxu0 %v979
      %v999 = vpop.f32.mrf.mxu0
      %v1000 = vadd.f32 0.0, %v999
      %v1001 = vpop.f32.mrf.mxu0
      %1002 = vdwg.mxu0
      %1003 = vmatpush.bf16.msra.mxu0 0
      %1004 = vmatpush.bf16.msra.mxu0 0
      %1005 = vmatpush.bf16.msra.mxu0 0
      %1006 = vmatpush.bf16.msra.mxu0 0
      %1007 = vmatpush.bf16.msra.mxu0 0
      %1008 = vmatpush.bf16.msra.mxu0 0
      %1009 = vmatpush.bf16.msra.mxu0 0
      %1010 = vmatpush.bf16.msra.mxu0 %v985
      %1011 = vmatmul.bf16.gmra.mxu0 %v979
      %v1012 = vpop.f32.mrf.mxu0
      %v1013 = vadd.f32 0.0, %v1012
      %v1014 = vpop.f32.mrf.mxu0
      %1015 = vdwg.mxu0
      %1016 = vmatpush.bf16.msra.mxu0 0
      %1017 = vmatpush.bf16.msra.mxu0 0
      %1018 = vmatpush.bf16.msra.mxu0 0
      %1019 = vmatpush.bf16.msra.mxu0 0
      %1020 = vmatpush.bf16.msra.mxu0 0
      %1021 = vmatpush.bf16.msra.mxu0 0
      %1022 = vmatpush.bf16.msra.mxu0 0
      %1023 = vmatpush.bf16.msra.mxu0 %v988
      %1024 = vmatmul.bf16.gmra.mxu0 %v979
      %v1025 = vpop.f32.mrf.mxu0
      %v1026 = vadd.f32 0.0, %v1025
      %v1027 = vpop.f32.mrf.mxu0
      %1028 = vdwg.mxu0
      %v1029 = vadd.f32 %v941, %v1000
      %v1030 = vadd.f32 %v942, %v1013
      %v1031 = vadd.f32 %v943, %v1026
      %v1032 = vld [vmem:[%s270] sm:$0xf]
      %1034 = vrot.lane.b32.xlu0 %v1032, 90
      %v1035 = vpop.permute.xlu0 %1034
      %v1036 = vrot.slane %v1035, 1
      %vm1037 = vcmask 736256
      %v1038 = vsel %vm1037, %v1035, %v1036
      %v1040 = vadd.f32 %v952, %v1038
      %vm1041 = vcmp.eq.f32.partialorder %v1040, 0.0
      %v1042 = vsel %vm1041, 1.0, %v1040
      %v1043 = vrcp.pop %v1042
      %v1045 = vperm.slane %v1043, 0
      %v1046 = vperm.slane %v1043, 1
      %v1047 = vperm.slane %v1043, 2
      %v1051 = vmul.f32 %v1029, %v1045
      %v1052 = vmul.f32 %v1030, %v1046
      %v1053 = vmul.f32 %v1031, %v1047
      %v1054 = vld [vmem:[%s4] sm:$0xff]
      %1056 = vset.pattern.permute.xlu0 0
      %1057 = vperm.xlu0 %1056, %v1054
      %v1058 = vpop.permute.xlu0 %1057
      %v1060 = vadd.f32 %v1051, %v1058
      %v1061 = vadd.f32 %v1052, %v1058
      %v1062 = vadd.f32 %v1053, %v1058
      %v1063 = vld [vmem:[%s3] sm:$0xff]
      %v1064 = vsel %vm1041, 1, 0
      %v1065 = vperm.slane %v1064, 0
      %v1066 = vperm.slane %v1064, 1
      %v1067 = vperm.slane %v1064, 2
      %vm1068 = vcmp.eq.s32.totalorder %v1065, 1
      %vm1069 = vcmp.eq.s32.totalorder %v1066, 1
      %vm1070 = vcmp.eq.s32.totalorder %v1067, 1
      %1072 = vset.pattern.permute.xlu0 0
      %1073 = vperm.xlu0 %1072, %v1063
      %v1074 = vpop.permute.xlu0 %1073
      %v1076 = vsel %vm1068, %v1074, %v1060
      %v1077 = vsel %vm1069, %v1074, %v1061
      %v1078 = vsel %vm1070, %v1074, %v1062
      %v1079 = vmax.f32 %v1076, 0.0
      %v1080 = vmax.f32 %v1077, 0.0
      %v1081 = vmax.f32 %v1078, 0.0
      %v1082 = vpack.c.bf16 %v1080, %v1079
      %v1083 = vpack.c.bf16 %v1081, %v1081
      %1084 = vst [vmem:[%s275] sm:$0xff] %v1082
      %1085 = vst [vmem:[%s275 + $0x8] sm:$0xf] %v1083
      %v1086 = vsel %vm1041, 0.0, 1.0
      %v1088 = vperm.slane %v1086, 0
      %v1089 = vperm.slane %v1086, 1
      %v1090 = vperm.slane %v1086, 2
      %v1094 = vpack.c.bf16 %v1089, %v1088
      %v1095 = vpack.c.bf16 %v1090, %v1090
      %v1098 = vrot.slane %v1094, 3
      %v1099 = vrot.slane %v1095, 6
      %v1100 = vrot.slane %v1095, 1
      %vm1101 = vcmask 1040384
      %v1104 = vsel %vm1101, %v1094, %v1098
      %vm1105 = vcmask 1042434
      %v1108 = vsel %vm1105, %v1099, %v1100
      %v1109 = vsel %vm314, %v1104, %v1108
      %vm1111 = vcmask 1040384
      %vm1112 = vsmask.f32 256
      %vm1113 = vmand %vm1111, %vm1112
      %vm1114 = vcmask 1041409
      %vm1115 = vsmask.f32 1280
      %vm1116 = vmand %vm1114, %vm1115
      %vm1117 = vmor %vm1116, %vm1113
      %vm1118 = vcmask 1042434
      %vm1119 = vsmask.f32 2304
      %vm1120 = vmand %vm1118, %vm1119
      %vm1121 = vmor %vm1120, %vm1117
      %v1122 = vld [vmem:[%s279] sm:$0x7]
      %v1123 = vsel %vm1121, %v1109, %v1122
      %1124 = vst [vmem:[%s279] sm:$0x7] %v1123
      %p1125 = scmp.lt.s32.totalorder %s18, 1
      %s1126 = scalar_select %p1125, %s18, 1
      %s1127 = smul.addr %s1126, 3
      %s1128 = smul.addr %s1127, 4
      %s1129 = scalar_lea.vmem %s5, %s1128
      %p1130 = scmp.lt.s32.totalorder %s18, 1
      %s1131 = scalar_select %p1130, %s18, 1
      %s1132 = smul.addr %s1131, 3
      %s1133 = scalar_lea.vmem %s6, %s1132
      // Predicated region
      $region41: #{pconv_block_forward.1} parent=39 // pred_check
        %p1134 = pneg %p151
      $region42: #{pconv_block_forward.1} parent=39 // pred_check_branch
        %1136 = sbr.rel (%p1134) target = $region44
      $region43: #{pconv_block_forward.1} parent=39 // pred_region
        _
      $region44: #{pconv_block_forward.1} parent=39 // pred_fallthru
        _
      // Predicated region
      $region45: #{pconv_block_forward.1} parent=39 // pred_check
        %p1137 = pneg %p177
      $region46: #{pconv_block_forward.1} parent=39 // pred_check_branch
        %1139 = sbr.rel (%p1137) target = $region48
      $region47: #{pconv_block_forward.1} parent=39 // pred_region
        _
      $region48: #{pconv_block_forward.1} parent=39 // pred_fallthru
        _
    $region40: #{pconv_block_forward.1} parent=5 // pred_fallthru
      _
    %p1140 = scmp.le.s32.totalorder 2, %s13
    // Predicated region
    $region49: #{pconv_block_forward.1} parent=5 // pred_check
      %p1141 = pneg %p1140
    $region50: #{pconv_block_forward.1} parent=5 // pred_check_branch
      %1143 = sbr.rel (%p1141) target = $region52
    $region51: #{pconv_block_forward.1} parent=5 // pred_region
      %s1144 = ssub.s32 %s13, 2
      // Predicated region
      $region53: #{pconv_block_forward.1} parent=51 // pred_check
        %p1145 = pneg %p157
      $region54: #{pconv_block_forward.1} parent=51 // pred_check_branch
        %1147 = sbr.rel (%p1145) target = $region56
      $region55: #{pconv_block_forward.1} parent=51 // pred_region
        %p1148 = scmp.lt.s32.totalorder %s19, 1
        %s1149 = scalar_select %p1148, %s19, 1
        %s1150 = smul.addr %s1149, 3
        %s1151 = smul.addr %s1150, 4
        %s1152 = scalar_lea.vmem %s5, %s1151
      $region56: #{pconv_block_forward.1} parent=51 // pred_fallthru
        _
      // Predicated region
      $region57: #{pconv_block_forward.1} parent=51 // pred_check
        %p1153 = pneg %p183
      $region58: #{pconv_block_forward.1} parent=51 // pred_check_branch
        %1155 = sbr.rel (%p1153) target = $region60
      $region59: #{pconv_block_forward.1} parent=51 // pred_region
        %p1156 = scmp.lt.s32.totalorder %s19, 1
        %s1157 = scalar_select %p1156, %s19, 1
        %s1158 = smul.addr %s1157, 3
        %s1159 = scalar_lea.vmem %s6, %s1158
      $region60: #{pconv_block_forward.1} parent=51 // pred_fallthru
        _
    $region52: #{pconv_block_forward.1} parent=5 // pred_fallthru
      _
  $region6: #{pconv_block_forward.1} parent=0 // loop_footer
    %s17 = sadd.s32 1, %s13
  $region7: #{pconv_block_forward.1} parent=0 // loop_footer_branch
    %12 = sbr.rel target = $region3
  $region8: #{pconv_block_forward.1} parent=0 // loop_exit
    _

</llo_original>
